<compile_context>
chip_gen: v7x
topology: tpu7x:2x2x1
jax: 0.10.0
libtpu: 0.0.40
codegen_flags: <defaults>
</compile_context>

<pallas_src>
import functools

import numpy as np

import jax
import jax.numpy as jnp
from jax.experimental import pallas as pl
from jax.experimental.pallas import tpu as pltpu


def _round_up(x, m):
    return (x + m - 1) // m * m


def _pad2d(x, rows, cols):
    r, c = x.shape
    if (rows, cols) != (r, c):
        x = jnp.pad(x, ((0, rows - r), (0, cols - c)))
    return x


_TM, _TN, _TK = 256, 256, 512


# --------------------------------------------------------------------------
# Tiled MXU matmul: out = [relu](A*scale+shift) @ B + bias
#   - bf16 operands, f32 accumulate
#   - specialization: single-K-tile path skips the scratch accumulator;
#     scale/shift/bias specs only exist when actually used.
# --------------------------------------------------------------------------
def _mm_kernel(*refs, nk, fuse_prologue, add_bias):
    it = iter(refs)
    a_ref = next(it)
    b_ref = next(it)
    sc_ref = sh_ref = bias_ref = None
    if fuse_prologue:
        sc_ref = next(it)
        sh_ref = next(it)
    if add_bias:
        bias_ref = next(it)
    o_ref = next(it)
    acc_ref = next(it) if nk > 1 else None

    a = a_ref[...]
    if fuse_prologue:
        a = jnp.maximum(a.astype(jnp.float32) * sc_ref[...] + sh_ref[...], 0.0)
        a = a.astype(jnp.bfloat16)
    part = jnp.dot(a, b_ref[...], preferred_element_type=jnp.float32)

    if nk == 1:
        if add_bias:
            part = part + bias_ref[...]
        o_ref[...] = part.astype(o_ref.dtype)
    else:
        @pl.when(pl.program_id(2) == 0)
        def _():
            acc_ref[...] = jnp.zeros_like(acc_ref)

        acc_ref[...] += part

        @pl.when(pl.program_id(2) == nk - 1)
        def _():
            r = acc_ref[...]
            if add_bias:
                r = r + bias_ref[...]
            o_ref[...] = r.astype(o_ref.dtype)


def pallas_matmul(a, b, *, bias=None, a_scale=None, a_shift=None,
                  relu_a=False, out_dtype=jnp.float32):
    """A: (M, K), B: (K, N), bias: (N,).  Optional fused per-K BN.

    a_scale given & relu_a=False -> BN folded exactly into B / bias.
    a_scale given & relu_a=True  -> f32 scale/shift/ReLU prologue in-kernel.
    A is always streamed as bf16.  K and N are padded to multiples of 128.
    """
    M, K = a.shape
    K2, N = b.shape
    assert K == K2
    b = b.astype(jnp.float32)
    if a_scale is not None and not relu_a:
        # (x*s+t) @ B == x @ (s[:,None]*B) + t @ B   (exact fold)
        s = a_scale.astype(jnp.float32)
        t = a_shift.astype(jnp.float32)
        extra = t @ b
        b = b * s[:, None]
        bias = extra if bias is None else jnp.asarray(bias, jnp.float32) + extra
        a_scale = None
    fuse_prologue = a_scale is not None
    add_bias = bias is not None

    # Lane-dense padding: K, N -> multiples of 128.
    Kp = _round_up(K, 128)
    tk = min(_TK, Kp)
    Kp = _round_up(Kp, tk)
    Np = _round_up(N, 128)
    tn = min(_TN, Np)
    Np = _round_up(Np, tn)
    if M >= 2 * _TM:
        tm = _TM
    else:
        tm = max(8, _round_up(max(M // 2, 1), 8))   # >=2 M-steps when feasible
    Mp = _round_up(M, tm)
    nk = Kp // tk

    a_in = _pad2d(a.astype(jnp.bfloat16), Mp, Kp)
    b_in = _pad2d(b, Kp, Np).astype(jnp.bfloat16)

    args = [a_in, b_in]
    in_specs = [pl.BlockSpec((tm, tk), lambda i, j, k: (i, k)),
                pl.BlockSpec((tk, tn), lambda i, j, k: (k, j))]
    if fuse_prologue:
        sc = _pad2d(a_scale.astype(jnp.float32).reshape(1, K), 1, Kp)
        sh = _pad2d(a_shift.astype(jnp.float32).reshape(1, K), 1, Kp)
        args += [sc, sh]
        in_specs += [pl.BlockSpec((1, tk), lambda i, j, k: (0, k)),
                     pl.BlockSpec((1, tk), lambda i, j, k: (0, k))]
    if add_bias:
        bv = _pad2d(jnp.asarray(bias, jnp.float32).reshape(1, N), 1, Np)
        args.append(bv)
        in_specs.append(pl.BlockSpec((1, tn), lambda i, j, k: (0, j)))

    scratch = [] if nk == 1 else [pltpu.VMEM((tm, tn), jnp.float32)]
    kern = functools.partial(_mm_kernel, nk=nk, fuse_prologue=fuse_prologue,
                             add_bias=add_bias)
    out = pl.pallas_call(
        kern,
        out_shape=jax.ShapeDtypeStruct((Mp, Np), out_dtype),
        grid=(Mp // tm, Np // tn, nk),
        in_specs=in_specs,
        out_specs=pl.BlockSpec((tm, tn), lambda i, j, k: (i, j)),
        scratch_shapes=scratch,
        compiler_params=pltpu.CompilerParams(
            dimension_semantics=("parallel", "parallel", "arbitrary")),
    )(*args)
    if (Mp, Np) != (M, N):
        out = out[:M, :N]
    return out


# --------------------------------------------------------------------------
# BatchNorm statistics: bf16-reading per-chunk partial (sum, sumsq) reduction.
# --------------------------------------------------------------------------
def _bn_stats_kernel(x_ref, s_ref, q_ref):
    x = x_ref[...].astype(jnp.float32)
    s_ref[0] = jnp.sum(x, axis=0, keepdims=True)
    q_ref[0] = jnp.sum(x * x, axis=0, keepdims=True)


def pallas_bn_stats(x2d):
    M, C = x2d.shape
    target = max(8, min(1024, _round_up(M, 8) // 2))     # >=2 chunks (v7x)
    tr = _round_up(min(target, max(M, 1)), 8)
    Mp = _round_up(M, tr)
    x = x2d
    if Mp != M:
        x = jnp.pad(x, ((0, Mp - M), (0, 0)))            # zero rows: no effect
    n = Mp // tr
    s, q = pl.pallas_call(
        _bn_stats_kernel,
        out_shape=(jax.ShapeDtypeStruct((n, 1, C), jnp.float32),
                   jax.ShapeDtypeStruct((n, 1, C), jnp.float32)),
        grid=(n,),
        in_specs=[pl.BlockSpec((tr, C), lambda i: (i, 0))],
        out_specs=(pl.BlockSpec((1, 1, C), lambda i: (i, 0, 0)),
                   pl.BlockSpec((1, 1, C), lambda i: (i, 0, 0))),
        compiler_params=pltpu.CompilerParams(
            dimension_semantics=("parallel",)),
    )(x)
    return s.sum(axis=(0, 1)), q.sum(axis=(0, 1))


def bn_scale_shift(x2d, gamma, beta, eps=1e-5):
    """Training-mode BN folded to per-channel scale/shift (batch statistics).

    gamma/beta shorter than the padded slab width are zero-padded, which makes
    padded slab channels map to exactly zero after the affine transform."""
    M, C = x2d.shape
    g = gamma.astype(jnp.float32)
    b = beta.astype(jnp.float32)
    if g.shape[0] != C:
        g = jnp.pad(g, (0, C - g.shape[0]))
        b = jnp.pad(b, (0, C - b.shape[0]))
    s, q = pallas_bn_stats(x2d)
    mean = s / M
    var = jnp.maximum(q / M - mean * mean, 0.0)           # biased variance
    scale = g * jax.lax.rsqrt(var + eps)
    shift = b - mean * scale
    return scale, shift


# --------------------------------------------------------------------------
# 3x3 stride-1 conv, im2col-free: per-image tap accumulation with fused
# BN+ReLU prologue (exact zero halo via mask) and fused residual add.
# --------------------------------------------------------------------------
def _conv3x3_kernel(xp_ref, sc_ref, sh_ref, m_ref, w_ref, res_ref, o_ref, *, H, W):
    Hp, Wp = H + 2, W + 2
    Co = o_ref.shape[-1]
    x = xp_ref[0].astype(jnp.float32)                      # (Hp*Wp, C)
    y = jnp.maximum(x * sc_ref[...] + sh_ref[...], 0.0)    # BN + ReLU
    y = (y * m_ref[...]).astype(jnp.bfloat16)              # zero the halo ring
    acc = jnp.zeros((H, W, Co), jnp.float32)
    for dy in range(3):
        for dx in range(3):
            p = jnp.dot(y, w_ref[dy, dx], preferred_element_type=jnp.float32)
            p = p.reshape(Hp, Wp, Co)
            acc = acc + p[dy:dy + H, dx:dx + W, :]
    o_ref[0] = (acc + res_ref[0].astype(jnp.float32)).astype(o_ref.dtype)


def pallas_conv3x3_bn_relu_add(x_slab, shape_nhw, scale, shift, w_taps,
                               residual_slab, out_dtype=jnp.bfloat16):
    """residual + conv3x3(relu(scale*x+shift)) on lane-padded channel slabs.

    x_slab: (M, Cin_p); w_taps: (3, 3, Cin_p, Cout_p) with the real weights
    placed at the output-channel offset of the new channels; residual:
    (M, Cout_p).  Output is the updated slab (M, Cout_p)."""
    N, H, W = shape_nhw
    M, C = x_slab.shape
    Co = residual_slab.shape[1]
    Hp, Wp = H + 2, W + 2
    xp = x_slab.reshape(N, H, W, C)
    xp = jnp.pad(xp, ((0, 0), (1, 1), (1, 1), (0, 0)))
    xp = xp.reshape(N, Hp * Wp, C).astype(jnp.bfloat16)
    mask = np.zeros((Hp, Wp, 1), np.float32)
    mask[1:H + 1, 1:W + 1, :] = 1.0
    mask = jnp.asarray(mask.reshape(Hp * Wp, 1))
    res = residual_slab.reshape(N, H, W, Co)

    out = pl.pallas_call(
        functools.partial(_conv3x3_kernel, H=H, W=W),
        out_shape=jax.ShapeDtypeStruct((N, H, W, Co), out_dtype),
        grid=(N,),
        in_specs=[pl.BlockSpec((1, Hp * Wp, C), lambda n: (n, 0, 0)),
                  pl.BlockSpec((1, C), lambda n: (0, 0)),
                  pl.BlockSpec((1, C), lambda n: (0, 0)),
                  pl.BlockSpec((Hp * Wp, 1), lambda n: (0, 0)),
                  pl.BlockSpec((3, 3, C, Co), lambda n: (0, 0, 0, 0)),
                  pl.BlockSpec((1, H, W, Co), lambda n: (n, 0, 0, 0))],
        out_specs=pl.BlockSpec((1, H, W, Co), lambda n: (n, 0, 0, 0)),
        compiler_params=pltpu.CompilerParams(
            dimension_semantics=("parallel",)),
    )(xp, scale.reshape(1, C).astype(jnp.float32),
      shift.reshape(1, C).astype(jnp.float32),
      mask, w_taps.astype(jnp.bfloat16), res)
    return out.reshape(M, Co)


def _make_tap_weights(w, cin_p, cout_p, out_offset):
    """w: (O, Cin, 3, 3) torch layout -> (3, 3, cin_p, cout_p) with the real
    block at input rows [:Cin] and output cols [out_offset:out_offset+O]."""
    O, Cin, kh, kw = w.shape
    wt = jnp.transpose(w, (2, 3, 1, 0))                    # (3, 3, Cin, O)
    full = jnp.zeros((kh, kw, cin_p, cout_p), w.dtype)
    return full.at[:, :, :Cin, out_offset:out_offset + O].set(wt)


# --------------------------------------------------------------------------
# 2x2 stride-2 pooling (max/avg), multi-row blocks, optional fused BN+ReLU.
# --------------------------------------------------------------------------
def _pool_kernel(*refs, mode, fuse):
    it = iter(refs)
    x_ref = next(it)
    sc_ref = sh_ref = None
    if fuse:
        sc_ref = next(it)
        sh_ref = next(it)
    o_ref = next(it)

    x = x_ref[...].astype(jnp.float32)                     # (R, 2, W2, 2, C)
    if fuse:
        x = jnp.maximum(x * sc_ref[...] + sh_ref[...], 0.0)
    a = x[:, 0, :, 0, :]
    b = x[:, 0, :, 1, :]
    c = x[:, 1, :, 0, :]
    d = x[:, 1, :, 1, :]
    if mode == "max":
        r = jnp.maximum(jnp.maximum(a, b), jnp.maximum(c, d))
    else:
        r = (a + b + c + d) * 0.25
    o_ref[...] = r.astype(o_ref.dtype)


def pallas_pool2x2(x, mode, scale=None, shift=None, out_dtype=jnp.bfloat16):
    """x: (N, H, W, C).  Optional fused per-channel scale/shift + ReLU."""
    N, H, W, C = x.shape
    H2, W2 = H // 2, W // 2
    xr = x[:, :2 * H2, :2 * W2, :].reshape(N * H2, 2, W2, 2, C)
    total = N * H2
    R = min(total, 128)
    if total >= 2:
        R = min(R, max(1, total // 2))                     # >=2 steps (v7x)
    while total % R:
        R -= 1
    fuse = scale is not None
    args = [xr]
    in_specs = [pl.BlockSpec((R, 2, W2, 2, C), lambda i: (i, 0, 0, 0, 0))]
    if fuse:
        args += [scale.reshape(1, 1, 1, 1, C).astype(jnp.float32),
                 shift.reshape(1, 1, 1, 1, C).astype(jnp.float32)]
        in_specs += [pl.BlockSpec((1, 1, 1, 1, C), lambda i: (0, 0, 0, 0, 0)),
                     pl.BlockSpec((1, 1, 1, 1, C), lambda i: (0, 0, 0, 0, 0))]
    out = pl.pallas_call(
        functools.partial(_pool_kernel, mode=mode, fuse=fuse),
        out_shape=jax.ShapeDtypeStruct((N * H2, W2, C), out_dtype),
        grid=(total // R,),
        in_specs=in_specs,
        out_specs=pl.BlockSpec((R, W2, C), lambda i: (i, 0, 0)),
        compiler_params=pltpu.CompilerParams(
            dimension_semantics=("parallel",)),
    )(*args)
    return out.reshape(N, H2, W2, C)


# --------------------------------------------------------------------------
# Global average pool fused with the final BN+ReLU (one image per grid step).
# --------------------------------------------------------------------------
def _gap_kernel(x_ref, sc_ref, sh_ref, o_ref):
    x = x_ref[0].astype(jnp.float32)                       # (HW, C)
    y = jnp.maximum(x * sc_ref[...] + sh_ref[...], 0.0)
    o_ref[0] = jnp.mean(y, axis=0, keepdims=True)


def pallas_gap_bn_relu(x3, scale, shift):
    """x3: (N, H*W, C) -> (N, C) == AdaptiveAvgPool2d(1)(relu(bn(x)))."""
    N, HW, C = x3.shape
    out = pl.pallas_call(
        _gap_kernel,
        out_shape=jax.ShapeDtypeStruct((N, 1, C), jnp.float32),
        grid=(N,),
        in_specs=[pl.BlockSpec((1, HW, C), lambda i: (i, 0, 0)),
                  pl.BlockSpec((1, C), lambda i: (0, 0)),
                  pl.BlockSpec((1, C), lambda i: (0, 0))],
        out_specs=pl.BlockSpec((1, 1, C), lambda i: (i, 0, 0)),
        compiler_params=pltpu.CompilerParams(
            dimension_semantics=("parallel",)),
    )(x3, scale.reshape(1, C).astype(jnp.float32),
      shift.reshape(1, C).astype(jnp.float32))
    return out.reshape(N, C)


# --------------------------------------------------------------------------
# 7x7 stem conv via im2col (XLA glue) + tiled Pallas matmul.
# TODO(synk): replace with a strided tap-accumulation kernel.
# --------------------------------------------------------------------------
def _im2col(x, kh, kw, stride, pad):
    N, H, W, C = x.shape
    xp = jnp.pad(x, ((0, 0), (pad, pad), (pad, pad), (0, 0)))
    Ho = (H + 2 * pad - kh) // stride + 1
    Wo = (W + 2 * pad - kw) // stride + 1
    cols = []
    for i in range(kh):
        for j in range(kw):
            cols.append(xp[:, i:i + stride * Ho:stride,
                           j:j + stride * Wo:stride, :])
    col = jnp.stack(cols, axis=3).reshape(N * Ho * Wo, kh * kw * C)
    return col, Ho, Wo


# --------------------------------------------------------------------------
# DenseNet parameters (deterministic synthetic init)
# --------------------------------------------------------------------------
def _conv_w(key, o, c, kh, kw):
    fan_in = c * kh * kw
    return jax.random.normal(key, (o, c, kh, kw), jnp.float32) / jnp.sqrt(float(fan_in))


def _bn_p(key, c):
    k1, k2 = jax.random.split(key)
    return {"gamma": 1.0 + 0.1 * jax.random.normal(k1, (c,), jnp.float32),
            "beta": 0.1 * jax.random.normal(k2, (c,), jnp.float32)}


def init_densenet_params(key, repetitions, k, compression, is_bottleneck,
                         in_channels, num_classes, start_channels):
    keys = iter(jax.random.split(key, 4096))
    params = {}
    params["conv"] = _conv_w(next(keys), start_channels, in_channels, 7, 7)
    params["bn1"] = _bn_p(next(keys), start_channels)

    def make_dense_block(layer_rep, ch_in):
        layers = []
        for i in range(layer_rep):
            cin = ch_in + k * i
            lp = {"bn1": _bn_p(next(keys), cin)}
            if is_bottleneck:
                lp["conv1"] = _conv_w(next(keys), 4 * k, cin, 1, 1)
                lp["bn2"] = _bn_p(next(keys), 4 * k)
                lp["conv2"] = _conv_w(next(keys), k, 4 * k, 3, 3)
            else:
                lp["conv1"] = _conv_w(next(keys), k, cin, 3, 3)
            layers.append(lp)
        return {"type": "dense", "layers": layers}

    blocks = []
    ch = start_channels
    for i in range(len(repetitions) - 1):
        blocks.append(make_dense_block(repetitions[i], ch))
        ch = ch + k * repetitions[i]
        blocks.append({"type": "transition",
                       "bn": _bn_p(next(keys), ch),
                       "conv": _conv_w(next(keys), int(ch * compression), ch, 1, 1)})
        ch = int(ch * compression)
    blocks.append(make_dense_block(repetitions[-1], ch))
    ch = ch + k * repetitions[-1]
    params["blocks"] = blocks
    params["bn2"] = _bn_p(next(keys), ch)

    nc = 1 if num_classes == 2 else num_classes
    params["fc_w"] = jax.random.normal(next(keys), (nc, ch), jnp.float32) / jnp.sqrt(float(ch))
    params["fc_b"] = 0.01 * jax.random.normal(next(keys), (nc,), jnp.float32)
    return params


# --------------------------------------------------------------------------
# DenseNet forward
# --------------------------------------------------------------------------
def dense_layer_fwd(slab, shape_nhw, c_real, lp, is_bottleneck):
    M, Cp = slab.shape
    sc1, sh1 = bn_scale_shift(slab, lp["bn1"]["gamma"], lp["bn1"]["beta"])
    if is_bottleneck:
        w1 = lp["conv1"]                                   # (4k, cin, 1, 1)
        C1 = w1.shape[0]
        C1p = _round_up(C1, 128)
        w1m = jnp.zeros((Cp, C1p), jnp.float32)
        w1m = w1m.at[:w1.shape[1], :C1].set(w1.reshape(C1, -1).T)
        # bn1+relu fused as an in-kernel prologue on the bf16 A tile.
        h = pallas_matmul(slab, w1m, a_scale=sc1, a_shift=sh1, relu_a=True,
                          out_dtype=jnp.bfloat16)          # (M, C1p)
        sc2, sh2 = bn_scale_shift(h, lp["bn2"]["gamma"], lp["bn2"]["beta"])
        w2 = lp["conv2"]                                   # (k, 4k, 3, 3)
        w_taps = _make_tap_weights(w2, C1p, Cp, c_real)
        out = pallas_conv3x3_bn_relu_add(h, shape_nhw, sc2, sh2, w_taps, slab)
    else:
        w2 = lp["conv1"]                                   # (k, cin, 3, 3)
        w_taps = _make_tap_weights(w2, Cp, Cp, c_real)
        out = pallas_conv3x3_bn_relu_add(slab, shape_nhw, sc1, sh1, w_taps, slab)
    return out


def densenet_forward(x_nchw, params, cfg):
    k = cfg["k"]
    is_bottleneck = cfg["is_bottleneck"]
    x = jnp.transpose(x_nchw.astype(jnp.float32), (0, 2, 3, 1))   # NHWC

    # ----- stem: conv7x7/s2/p3 -> bn -> relu -> maxpool2x2 -----
    w = params["conv"]
    C0 = w.shape[0]
    Cp = _round_up(C0, 128)
    col, Ho, Wo = _im2col(x, 7, 7, 2, 3)
    w_mat = jnp.transpose(w, (2, 3, 1, 0)).reshape(-1, C0)
    w_mat = jnp.pad(w_mat, ((0, 0), (0, Cp - C0)))          # lane-pad out chans
    slab = pallas_matmul(col, w_mat, out_dtype=jnp.bfloat16)
    N = x.shape[0]
    H, W_sp = Ho, Wo
    c_real = C0
    sc, sh = bn_scale_shift(slab, params["bn1"]["gamma"], params["bn1"]["beta"])
    xm = pallas_pool2x2(slab.reshape(N, H, W_sp, Cp), "max", sc, sh)
    H, W_sp = H // 2, W_sp // 2
    slab = xm.reshape(N * H * W_sp, Cp)

    # ----- dense blocks / transitions -----
    for blk in params["blocks"]:
        if blk["type"] == "dense":
            rep = len(blk["layers"])
            Cp_blk = _round_up(c_real + k * rep, 128)
            if Cp_blk > slab.shape[1]:
                slab = jnp.pad(slab, ((0, 0), (0, Cp_blk - slab.shape[1])))
                Cp = Cp_blk
            for lp in blk["layers"]:
                slab = dense_layer_fwd(slab, (N, H, W_sp), c_real, lp,
                                       is_bottleneck)
                c_real += k
        else:
            sc, sh = bn_scale_shift(slab, blk["bn"]["gamma"], blk["bn"]["beta"])
            w = blk["conv"]                                 # (Cout, C, 1, 1)
            Cout = w.shape[0]
            Cp_out = _round_up(Cout, 128)
            w_mat = jnp.zeros((Cp, Cp_out), jnp.float32)
            w_mat = w_mat.at[:w.shape[1], :Cout].set(w.reshape(Cout, -1).T)
            # BN (no ReLU) folded exactly into the weights / bias.
            h = pallas_matmul(slab, w_mat, a_scale=sc, a_shift=sh,
                              relu_a=False, out_dtype=jnp.bfloat16)
            h = pallas_pool2x2(h.reshape(N, H, W_sp, Cp_out), "avg")
            H, W_sp = H // 2, W_sp // 2
            Cp = Cp_out
            c_real = Cout
            slab = h.reshape(N * H * W_sp, Cp)

    # ----- head: bn -> relu -> global avg pool -> fc -----
    sc, sh = bn_scale_shift(slab, params["bn2"]["gamma"], params["bn2"]["beta"])
    pooled = pallas_gap_bn_relu(slab.reshape(N, H * W_sp, Cp), sc, sh)  # (N, Cp)
    fc_w = params["fc_w"]
    nc = fc_w.shape[0]
    fcw = jnp.zeros((Cp, nc), jnp.float32).at[:fc_w.shape[1], :].set(fc_w.T)
    logits = pallas_matmul(pooled, fcw, bias=params["fc_b"],
                           out_dtype=jnp.float32)
    return logits


# --------------------------------------------------------------------------
if __name__ == "__main__":
    key = jax.random.PRNGKey(0)
    k_x, k_p = jax.random.split(key)

    # Small DenseNet config: repetitions=[2,2], growth k=8, bottleneck layers.
    repetitions = [2, 2]
    growth_k = 8
    compression = 0.5
    is_bottleneck = True
    in_channels = 3
    num_classes = 10
    start_channels = 16

    x = jax.random.normal(k_x, (2, in_channels, 32, 32), jnp.float32)  # NCHW
    params = init_densenet_params(k_p, repetitions, growth_k, compression,
                                  is_bottleneck, in_channels, num_classes,
                                  start_channels)
    cfg = {"k": growth_k, "is_bottleneck": is_bottleneck}

    # Sanity checks: padded bf16-operand matmul vs a bf16 XLA reference.
    ka, kb = jax.random.split(jax.random.PRNGKey(1))
    a = jax.random.normal(ka, (33, 144), jnp.float32)
    b = jax.random.normal(kb, (144, 17), jnp.float32)
    ref = jnp.dot(a.astype(jnp.bfloat16), b.astype(jnp.bfloat16),
                  preferred_element_type=jnp.float32)
    got = pallas_matmul(a, b)
    assert jnp.allclose(got, ref, atol=5e-2, rtol=5e-2), "matmul mismatch"

    a2 = jax.random.normal(ka, (64, 1200), jnp.float32)
    b2 = jax.random.normal(kb, (1200, 96), jnp.float32)
    ref2 = jnp.dot(a2.astype(jnp.bfloat16), b2.astype(jnp.bfloat16),
                   preferred_element_type=jnp.float32)
    got2 = pallas_matmul(a2, b2)                      # multi-K-tile accumulator
    assert jnp.allclose(got2, ref2, atol=2e-1, rtol=2e-2), "matmul-K mismatch"

    fwd = jax.jit(lambda inp: densenet_forward(inp, params, cfg))
    logits = jax.block_until_ready(fwd(x))

    assert logits.shape == (2, num_classes), logits.shape
    assert bool(jnp.all(jnp.isfinite(logits)))
    print("KERNEL_OK")
</pallas_src>

<mosaic_0001>
module attributes {stable_mosaic.version = 11 : i64} {
  func.func @_mm_kernel(%arg0: i32, %arg1: i32, %arg2: i32, %arg3: memref<16x256xbf16, #tpu.memory_space<vmem>>, %arg4: memref<256x128xbf16, #tpu.memory_space<vmem>>, %arg5: memref<16x128xf32, #tpu.memory_space<vmem>>) attributes {dimension_semantics = [#tpu.dimension_semantics<parallel>, #tpu.dimension_semantics<parallel>, #tpu.dimension_semantics<arbitrary>], iteration_bounds = array<i64: 3, 1, 1>, scalar_prefetch = 0 : i64, scratch_operands = 0 : i64, tpu.core_type = #tpu.core_type<tc>, window_params = [{transform_indices = @transform_0, window_bounds = array<i64: 16, 256>}, {transform_indices = @transform_1, window_bounds = array<i64: 256, 128>}, {transform_indices = @transform_2, window_bounds = array<i64: 16, 128>}]} {
    %c0 = arith.constant 0 : index
    %c0_0 = arith.constant 0 : index
    %0 = vector.load %arg3[%c0, %c0_0] : memref<16x256xbf16, #tpu.memory_space<vmem>>, vector<16x256xbf16>
    %c0_1 = arith.constant 0 : index
    %c0_2 = arith.constant 0 : index
    %1 = vector.load %arg4[%c0_1, %c0_2] : memref<256x128xbf16, #tpu.memory_space<vmem>>, vector<256x128xbf16>
    %cst = arith.constant dense<0.000000e+00> : vector<16x128xf32>
    %2 = tpu.matmul %0, %1, %cst {dimension_numbers = #tpu.dot_dimension_numbers<[1], [0], [0], [1], [0, 0, 1, 1], [], []>} : vector<16x256xbf16>, vector<256x128xbf16>, vector<16x128xf32> -> vector<16x128xf32>
    %c0_3 = arith.constant 0 : index
    %c0_4 = arith.constant 0 : index
    %3 = vector.load %arg5[%c0_3, %c0_4] : memref<16x128xf32, #tpu.memory_space<vmem>>, vector<16x128xf32>
    tpu.vector_store %arg5[%c0_3, %c0_4], %2 {strides = array<i32>} : memref<16x128xf32, #tpu.memory_space<vmem>>, vector<16x128xf32>,
    return
  }
  func.func @transform_0(%arg0: i32, %arg1: i32, %arg2: i32) -> (i32, i32) {
    %c0_i32 = arith.constant 0 : i32
    return %arg0, %arg2 : i32, i32
  }
  func.func @transform_1(%arg0: i32, %arg1: i32, %arg2: i32) -> (i32, i32) {
    %c0_i32 = arith.constant 0 : i32
    return %arg2, %arg1 : i32, i32
  }
  func.func @transform_2(%arg0: i32, %arg1: i32, %arg2: i32) -> (i32, i32) {
    %c0_i32 = arith.constant 0 : i32
    return %arg0, %arg1 : i32, i32
  }
}

</mosaic_0001>

<llo_original>
// kernel: tpu_custom_call.1
$region0: #{tpu_custom_call.1}
  #allocation0 [shape = 'u32[]', space=smem, size = 0x4, offset = 0x4, fixed_abs, tag = 'smem constant byte address 0x4 - core index']
  #allocation1 [shape = 'u32[144,128]{1,0:T(1,128)}', space=vmem, size = 0x12000, scoped, tag = 'internal scratch']
  %s0 = inlined_call_operand.hbm [shape: bf16[48,256], index: 0, kind: input, shape index: {}]
  %s1 = inlined_call_operand.hbm [shape: bf16[256,128], index: 1, kind: input, shape index: {}]
  %s2 = inlined_call_operand.hbm [shape: f32[48,128], index: 2, kind: output, shape index: {}]
  %s3 = sld [smem:[#allocation0]]
  $region49: #{tpu_custom_call.1} parent=0
    _
  %s5 = ssub.s32 1, %s3
  %s6 = scalar_select 0, %s5, %s3
  $region1: #{tpu_custom_call.1} parent=0
    #allocation2 [shape = 'u8[16384]{0}', space=vmem, size = 0x4000, scoped, tag = 'input window, operand 0']
    #allocation3 [shape = 's32[2]{0}', space=sflag, size = 0x8, scoped, tag = 'scoped memory for tpu_custom_call.1']
    #allocation4 [shape = 's32[2]{0}', space=sflag, size = 0x8, scoped, tag = 'scoped memory for tpu_custom_call.1']
    #allocation5 [shape = 'u8[65536]{0}', space=vmem, size = 0x10000, scoped, tag = 'input window, operand 1, single buffered']
    #allocation6 [shape = 's32[1]{0}', space=sflag, size = 0x4, scoped, tag = 'scoped memory for tpu_custom_call.1']
    #allocation7 [shape = 'u8[16384]{0}', space=vmem, size = 0x4000, scoped, tag = 'output window, operand 0']
    %7 = vsyncpa [#allocation3], 0
    %s8 = scalar_lea.sflag [#allocation3], 1
    %9 = vsyncpa %s8, 0
    %10 = vsyncpa [#allocation6], 0
    %11 = vsyncpa [#allocation4], 0
    %s12 = scalar_lea.sflag [#allocation4], 1
    %13 = vsyncpa %s12, 0
    loop: start=0, step=1, limit=5
    $region2: #{tpu_custom_call.1} parent=1 // loop_pre_header
      _
    $region3: #{tpu_custom_call.1} parent=1 // loop_header
      %s15 = sphi 0, %s19
      %p16 = scmp.ge.s32.totalorder %s15, 5
      %s22 = sphi 0, %s41
      %s23 = sphi 0, %s37
      %s24 = sphi 0, %s33
      %s25 = sphi 0, %s22
      %s26 = sphi 0, %s23
      %s27 = sphi 0, %s24
      %s28 = sphi 0, %s25
      %s29 = sphi 0, %s26
      %s30 = sphi 0, %s27
      %s46 = sphi 0, %s48
      %s49 = sphi 0, %s46
      %s50 = sphi 0, %s49
      %s66 = sphi 0, %s50
      %s74 = sphi 0, %s76
      %s77 = sphi 0, %s74
      %s78 = sphi 0, %s77
      %s94 = sphi 0, %s78
      %s102 = sphi 0, %s104
      %s105 = sphi 0, %s102
      %s106 = sphi 0, %s105
      %s122 = sphi 0, %s106
    $region4: #{tpu_custom_call.1} parent=1 // loop_header_branch
      %18 = sbr.rel (%p16) target = $region8
    $region5: #{tpu_custom_call.1} parent=1 // loop_body
      %s20 = ssub.s32 %s15, 1
      %s21 = ssub.s32 %s15, 2
      %s31 = sadd.s32 1, %s24
      %p32 = scmp.ge.s32.totalorder %s31, 1
      %s33 = scalar_select %p32, 0, %s31
      %s34 = sadd.s32 1, %s23
      %s35 = scalar_select %p32, %s34, %s23
      %p36 = scmp.ge.s32.totalorder %s35, 1
      %s37 = scalar_select %p36, 0, %s35
      %s38 = sadd.s32 1, %s22
      %s39 = scalar_select %p36, %s38, %s22
      %p40 = scmp.ge.s32.totalorder %s39, 3
      %s41 = scalar_select %p40, 0, %s39
      %s42 = ssub.s32 %s22, %s41
      %s43 = ssub.s32 %s24, %s33
      %s44 = sor.u32 %s42, %s43
      %p45 = scmp.eq.s32.totalorder %s44, 0
      %s47 = sadd.s32 %s46, 1
      %s48 = scalar_select %p45, %s46, %s47
      %p51 = pneg %p45
      %p52 = scmp.eq.s32.totalorder %s15, 2
      %p53 = por %p51, %p52
      %p54 = scmp.ne.s32.totalorder %s46, %s49
      %p55 = scmp.eq.s32.totalorder %s15, 0
      %p56 = por %p54, %p55
      %p57 = scmp.ne.s32.totalorder %s46, %s49
      %p58 = scmp.eq.s32.totalorder %s20, 2
      %p59 = por %p57, %p58
      %p60 = scmp.ne.s32.totalorder %s49, %s50
      %p61 = scmp.eq.s32.totalorder %s20, 0
      %p62 = por %p60, %p61
      %p63 = scmp.ne.s32.totalorder %s49, %s50
      %p64 = scmp.eq.s32.totalorder %s21, 2
      %p65 = por %p63, %p64
      %p67 = scmp.ne.s32.totalorder %s50, %s66
      %p68 = scmp.eq.s32.totalorder %s21, 0
      %p69 = por %p67, %p68
      %s70 = ssub.s32 %s24, %s33
      %s71 = ssub.s32 %s23, %s37
      %s72 = sor.u32 %s70, %s71
      %p73 = scmp.eq.s32.totalorder %s72, 0
      %s75 = sadd.s32 %s74, 1
      %s76 = scalar_select %p73, %s74, %s75
      %p79 = pneg %p73
      %p80 = scmp.eq.s32.totalorder %s15, 2
      %p81 = por %p79, %p80
      %p82 = scmp.ne.s32.totalorder %s74, %s77
      %p83 = scmp.eq.s32.totalorder %s15, 0
      %p84 = por %p82, %p83
      %p85 = scmp.ne.s32.totalorder %s74, %s77
      %p86 = scmp.eq.s32.totalorder %s20, 2
      %p87 = por %p85, %p86
      %p88 = scmp.ne.s32.totalorder %s77, %s78
      %p89 = scmp.eq.s32.totalorder %s20, 0
      %p90 = por %p88, %p89
      %p91 = scmp.ne.s32.totalorder %s77, %s78
      %p92 = scmp.eq.s32.totalorder %s21, 2
      %p93 = por %p91, %p92
      %p95 = scmp.ne.s32.totalorder %s78, %s94
      %p96 = scmp.eq.s32.totalorder %s21, 0
      %p97 = por %p95, %p96
      %s98 = ssub.s32 %s22, %s41
      %s99 = ssub.s32 %s23, %s37
      %s100 = sor.u32 %s98, %s99
      %p101 = scmp.eq.s32.totalorder %s100, 0
      %s103 = sadd.s32 %s102, 1
      %s104 = scalar_select %p101, %s102, %s103
      %p107 = pneg %p101
      %p108 = scmp.eq.s32.totalorder %s15, 2
      %p109 = por %p107, %p108
      %p110 = scmp.ne.s32.totalorder %s102, %s105
      %p111 = scmp.eq.s32.totalorder %s15, 0
      %p112 = por %p110, %p111
      %p113 = scmp.ne.s32.totalorder %s102, %s105
      %p114 = scmp.eq.s32.totalorder %s20, 2
      %p115 = por %p113, %p114
      %p116 = scmp.ne.s32.totalorder %s105, %s106
      %p117 = scmp.eq.s32.totalorder %s20, 0
      %p118 = por %p116, %p117
      %p119 = scmp.ne.s32.totalorder %s105, %s106
      %p120 = scmp.eq.s32.totalorder %s21, 2
      %p121 = por %p119, %p120
      %p123 = scmp.ne.s32.totalorder %s106, %s122
      %p124 = scmp.eq.s32.totalorder %s21, 0
      %p125 = por %p123, %p124
      %p126 = scmp.le.s32.totalorder 1, %s15
      %p127 = scmp.lt.s32.totalorder %s15, 4
      %p128 = pnand %p126, %p127
      %p129 = pneg %p128
      // Predicated region
      $region9: #{tpu_custom_call.1} parent=5 // pred_check
        _
      $region10: #{tpu_custom_call.1} parent=5 // pred_check_branch
        %131 = sbr.rel (%p128) target = $region12
      $region11: #{tpu_custom_call.1} parent=5 // pred_region
        %s132 = ssub.s32 %s15, 1
        // Predicated region
        $region13: #{tpu_custom_call.1} parent=11 // pred_check
          %p133 = pneg %p90
        $region14: #{tpu_custom_call.1} parent=11 // pred_check_branch
          %135 = sbr.rel (%p133) target = $region16
        $region15: #{tpu_custom_call.1} parent=11 // pred_region
          %s136 = smul.u32 32, %s27
          %s138 = ssub.s32 2048, 2048
          %139 = vsyncadd [#allocation6], %s138
          %s140 = sadd.s32 %s26, %s136
          %s141 = smul.addr %s140, 64
          %s142 = scalar_lea.hbm %s1, %s141
          %s143 = sshll.u32 [#allocation5], 4
          %s144 = int_to_ptr.vmem [resolvable:$true] %s143
          %149 = dma.hbm_to_vmem [thread:$0]  %s142, 2048, %s144, [#allocation6], 64, 64, 4
        $region16: #{tpu_custom_call.1} parent=11 // pred_fallthru
          _
      $region12: #{tpu_custom_call.1} parent=5 // pred_fallthru
        _
      %p150 = scmp.lt.s32.totalorder %s15, 3
      // Predicated region
      $region17: #{tpu_custom_call.1} parent=5 // pred_check
        %p151 = pneg %p150
      $region18: #{tpu_custom_call.1} parent=5 // pred_check_branch
        %153 = sbr.rel (%p151) target = $region20
      $region19: #{tpu_custom_call.1} parent=5 // pred_region
        // Predicated region
        $region21: #{tpu_custom_call.1} parent=19 // pred_check
          %p154 = pneg %p56
        $region22: #{tpu_custom_call.1} parent=19 // pred_check_branch
          %156 = sbr.rel (%p154) target = $region24
        $region23: #{tpu_custom_call.1} parent=19 // pred_region
          %s157 = sand.u32 %s46, 1
          %s158 = scalar_lea.sflag [#allocation3], %s157
          %s159 = sand.u32 %s46, 1
          %s160 = smul.addr %s159, 16
          %s161 = scalar_lea.vmem [#allocation2], %s160
          %s162 = smul.u32 2, %s22
          %s163 = smul.u32 2, %s24
          %s165 = ssub.s32 256, 256
          %166 = vsyncadd %s158, %s165
          %s167 = smul.addr %s162, 2
          %s168 = sadd.s32 %s163, %s167
          %s169 = smul.addr %s168, 64
          %s170 = scalar_lea.hbm %s0, %s169
          %s171 = sshll.u32 %s161, 4
          %s172 = int_to_ptr.vmem [resolvable:$true] %s171
          %177 = dma.hbm_to_vmem [thread:$0]  %s170, 256, %s172, %s158, 128, 128, 8
        $region24: #{tpu_custom_call.1} parent=19 // pred_fallthru
          _
      $region20: #{tpu_custom_call.1} parent=5 // pred_fallthru
        _
      %p178 = scmp.le.s32.totalorder 1, %s15
      %p179 = scmp.lt.s32.totalorder %s15, 4
      %p180 = pnand %p178, %p179
      %p181 = pneg %p180
      // Predicated region
      $region25: #{tpu_custom_call.1} parent=5 // pred_check
        _
      $region26: #{tpu_custom_call.1} parent=5 // pred_check_branch
        %183 = sbr.rel (%p180) target = $region28
      $region27: #{tpu_custom_call.1} parent=5 // pred_region
        %s184 = ssub.s32 %s15, 1
        %s185 = sand.u32 %s49, 1
        %s186 = scalar_lea.sflag [#allocation3], %s185
        %s187 = sand.u32 %s49, 1
        %s188 = smul.addr %s187, 16
        %s189 = scalar_lea.vmem [#allocation2], %s188
        // Predicated region
        $region29: #{tpu_custom_call.1} parent=27 // pred_check
          %p190 = pneg %p62
        $region30: #{tpu_custom_call.1} parent=27 // pred_check_branch
          %192 = sbr.rel (%p190) target = $region32
        $region31: #{tpu_custom_call.1} parent=27 // pred_region
          %193 = dma.done %s186, 256
        $region32: #{tpu_custom_call.1} parent=27 // pred_fallthru
          _
        // Predicated region
        $region33: #{tpu_custom_call.1} parent=27 // pred_check
          %p194 = pneg %p90
        $region34: #{tpu_custom_call.1} parent=27 // pred_check_branch
          %196 = sbr.rel (%p194) target = $region36
        $region35: #{tpu_custom_call.1} parent=27 // pred_region
          %197 = dma.done [#allocation6], 2048
        $region36: #{tpu_custom_call.1} parent=27 // pred_fallthru
          _
        %s198 = sand.u32 %s49, 1
        %s199 = scalar_lea.sflag [#allocation3], %s198
        %s200 = sand.u32 %s49, 1
        %s201 = smul.addr %s200, 16
        %s202 = scalar_lea.vmem [#allocation2], %s201
        %p203 = pneg %p62
        %p204 = pneg %p59
        %p205 = pneg %p90
        %p206 = pneg %p87
        %p207 = pneg %p118
        %p208 = pneg %p115
        %s209 = sand.u32 %s105, 1
        %s210 = scalar_lea.sflag [#allocation4], %s209
        %s211 = sand.u32 %s105, 1
        %s212 = smul.addr %s211, 16
        %s213 = scalar_lea.vmem [#allocation7], %s212
        %s214 = smul.u32 2, %s25
        %s215 = smul.u32 2, %s27
        %s216 = smul.u32 32, %s27
        %s217 = smul.u32 2, %s25
        %v219 = vld [vmem:[%s189] sm:$0xff]
        %v220 = vld [vmem:[%s189 + $0x8] sm:$0xff]
        %v221 = vld [vmem:[#allocation5] sm:$0xf]
        %v222 = vld [vmem:[#allocation5 + $0x4] sm:$0xf]
        %v223 = vld [vmem:[#allocation5 + $0x8] sm:$0xf]
        %v224 = vld [vmem:[#allocation5 + $0xc] sm:$0xf]
        %v225 = vld [vmem:[#allocation5 + $0x10] sm:$0xf]
        %v226 = vld [vmem:[#allocation5 + $0x14] sm:$0xf]
        %v227 = vld [vmem:[#allocation5 + $0x18] sm:$0xf]
        %v228 = vld [vmem:[#allocation5 + $0x1c] sm:$0xf]
        %v229 = vld [vmem:[#allocation5 + $0x20] sm:$0xf]
        %v230 = vld [vmem:[#allocation5 + $0x24] sm:$0xf]
        %v231 = vld [vmem:[#allocation5 + $0x28] sm:$0xf]
        %v232 = vld [vmem:[#allocation5 + $0x2c] sm:$0xf]
        %v233 = vld [vmem:[#allocation5 + $0x30] sm:$0xf]
        %v234 = vld [vmem:[#allocation5 + $0x34] sm:$0xf]
        %v235 = vld [vmem:[#allocation5 + $0x38] sm:$0xf]
        %v236 = vld [vmem:[#allocation5 + $0x3c] sm:$0xf]
        %v237 = vld [vmem:[#allocation5 + $0x40] sm:$0xf]
        %v238 = vld [vmem:[#allocation5 + $0x44] sm:$0xf]
        %v239 = vld [vmem:[#allocation5 + $0x48] sm:$0xf]
        %v240 = vld [vmem:[#allocation5 + $0x4c] sm:$0xf]
        %v241 = vld [vmem:[#allocation5 + $0x50] sm:$0xf]
        %v242 = vld [vmem:[#allocation5 + $0x54] sm:$0xf]
        %v243 = vld [vmem:[#allocation5 + $0x58] sm:$0xf]
        %v244 = vld [vmem:[#allocation5 + $0x5c] sm:$0xf]
        %v245 = vld [vmem:[#allocation5 + $0x60] sm:$0xf]
        %v246 = vld [vmem:[#allocation5 + $0x64] sm:$0xf]
        %v247 = vld [vmem:[#allocation5 + $0x68] sm:$0xf]
        %v248 = vld [vmem:[#allocation5 + $0x6c] sm:$0xf]
        %v249 = vld [vmem:[#allocation5 + $0x70] sm:$0xf]
        %v250 = vld [vmem:[#allocation5 + $0x74] sm:$0xf]
        %v251 = vld [vmem:[#allocation5 + $0x78] sm:$0xf]
        %v252 = vld [vmem:[#allocation5 + $0x7c] sm:$0xf]
        %v255 = vunpack.c.l.b16 %v219
        %v256 = vunpack.c.h.b16 %v219
        %v257 = vunpack.c.l.b16 %v220
        %v258 = vunpack.c.h.b16 %v220
        %v259 = vpack.c.b16 %v257, %v255
        %v260 = vpack.c.b16 %v258, %v256
        %v295 = vunpack.c.l.b16 %v221
        %v296 = vunpack.c.l.b16 %v222
        %v297 = vunpack.c.l.b16 %v223
        %v298 = vunpack.c.l.b16 %v224
        %v299 = vunpack.c.l.b16 %v225
        %v300 = vunpack.c.l.b16 %v226
        %v301 = vunpack.c.l.b16 %v227
        %v302 = vunpack.c.l.b16 %v228
        %v303 = vunpack.c.l.b16 %v229
        %v304 = vunpack.c.l.b16 %v230
        %v305 = vunpack.c.l.b16 %v231
        %v306 = vunpack.c.l.b16 %v232
        %v307 = vunpack.c.l.b16 %v233
        %v308 = vunpack.c.l.b16 %v234
        %v309 = vunpack.c.l.b16 %v235
        %v310 = vunpack.c.l.b16 %v236
        %v311 = vunpack.c.l.b16 %v237
        %v312 = vunpack.c.l.b16 %v238
        %v313 = vunpack.c.l.b16 %v239
        %v314 = vunpack.c.l.b16 %v240
        %v315 = vunpack.c.l.b16 %v241
        %v316 = vunpack.c.l.b16 %v242
        %v317 = vunpack.c.l.b16 %v243
        %v318 = vunpack.c.l.b16 %v244
        %v319 = vunpack.c.l.b16 %v245
        %v320 = vunpack.c.l.b16 %v246
        %v321 = vunpack.c.l.b16 %v247
        %v322 = vunpack.c.l.b16 %v248
        %v323 = vunpack.c.l.b16 %v249
        %v324 = vunpack.c.l.b16 %v250
        %v325 = vunpack.c.l.b16 %v251
        %v326 = vunpack.c.l.b16 %v252
        %v327 = vpack.c.b16 %v296, %v295
        %v328 = vpack.c.b16 %v298, %v297
        %v329 = vpack.c.b16 %v300, %v299
        %v330 = vpack.c.b16 %v302, %v301
        %v331 = vpack.c.b16 %v304, %v303
        %v332 = vpack.c.b16 %v306, %v305
        %v333 = vpack.c.b16 %v308, %v307
        %v334 = vpack.c.b16 %v310, %v309
        %v335 = vpack.c.b16 %v312, %v311
        %v336 = vpack.c.b16 %v314, %v313
        %v337 = vpack.c.b16 %v316, %v315
        %v338 = vpack.c.b16 %v318, %v317
        %v339 = vpack.c.b16 %v320, %v319
        %v340 = vpack.c.b16 %v322, %v321
        %v341 = vpack.c.b16 %v324, %v323
        %v342 = vpack.c.b16 %v326, %v325
        %359 = vmatprep.subr.bf16.mxu0 0
        %360 = vmatpush1.bf16.msra.mxu0 %v327
        %361 = vmatprep.subr.bf16.mxu0 0
        %362 = vmatpush1.bf16.msra.mxu0 %v328
        %363 = vmatprep.subr.bf16.mxu0 0
        %364 = vmatpush1.bf16.msra.mxu0 %v329
        %365 = vmatprep.subr.bf16.mxu0 0
        %366 = vmatpush1.bf16.msra.mxu0 %v330
        %367 = vmatprep.subr.bf16.mxu0 0
        %368 = vmatpush1.bf16.msra.mxu0 %v331
        %369 = vmatprep.subr.bf16.mxu0 0
        %370 = vmatpush1.bf16.msra.mxu0 %v332
        %371 = vmatprep.subr.bf16.mxu0 0
        %372 = vmatpush1.bf16.msra.mxu0 %v333
        %373 = vmatprep.subr.bf16.mxu0 0
        %374 = vmatpush1.bf16.msra.mxu0 %v334
        %375 = vmatprep.subr.bf16.mxu0 0
        %376 = vmatpush1.bf16.msra.mxu0 %v335
        %377 = vmatprep.subr.bf16.mxu0 0
        %378 = vmatpush1.bf16.msra.mxu0 %v336
        %379 = vmatprep.subr.bf16.mxu0 0
        %380 = vmatpush1.bf16.msra.mxu0 %v337
        %381 = vmatprep.subr.bf16.mxu0 0
        %382 = vmatpush1.bf16.msra.mxu0 %v338
        %383 = vmatprep.subr.bf16.mxu0 0
        %384 = vmatpush1.bf16.msra.mxu0 %v339
        %385 = vmatprep.subr.bf16.mxu0 0
        %386 = vmatpush1.bf16.msra.mxu0 %v340
        %387 = vmatprep.subr.bf16.mxu0 0
        %388 = vmatpush1.bf16.msra.mxu0 %v341
        %389 = vmatprep.subr.bf16.mxu0 0
        %390 = vmatpush1.bf16.msra.mxu0 %v342
        %391 = vmatprep.mubr.bf16.mxu0 %v260
        %392 = vmatmul.mubr.bf16.gmra.mrb[0].mxu0 %v259
        %v393 = vpop.f32.mrb[0].mxu0
        %v394 = vadd.f32 0.0, %v393
        %v395 = vpop.f32.mrb[0].mxu0
        %v396 = vpop.f32.mrb[0].mxu0
        %v397 = vadd.f32 0.0, %v396
        %v398 = vpop.f32.mrb[0].mxu0
        %399 = vdwg.mxu0
        %400 = vst [vmem:[%s213] sm:$0xff] %v394
        %401 = vst [vmem:[%s213 + $0x8] sm:$0xff] %v397
        %s402 = sand.u32 %s105, 1
        %s403 = scalar_lea.sflag [#allocation4], %s402
        %s404 = sand.u32 %s105, 1
        %s405 = smul.addr %s404, 16
        %s406 = scalar_lea.vmem [#allocation7], %s405
        // Predicated region
        $region37: #{tpu_custom_call.1} parent=27 // pred_check
          %p407 = pneg %p115
        $region38: #{tpu_custom_call.1} parent=27 // pred_check_branch
          %409 = sbr.rel (%p407) target = $region40
        $region39: #{tpu_custom_call.1} parent=27 // pred_region
          %s410 = smul.u32 2, %s25
          %s412 = ssub.s32 256, 256
          %413 = vsyncadd %s403, %s412
          %s414 = sadd.s32 %s26, %s410
          %s415 = smul.addr %s414, 128
          %s416 = scalar_lea.hbm %s2, %s415
          %s417 = sshll.u32 %s406, 4
          %s418 = int_to_ptr.vmem [resolvable:$true] %s417
          %423 = dma.vmem_to_hbm [thread:$0]  %s418, 256, %s416, %s403, 128, 128, 8
        $region40: #{tpu_custom_call.1} parent=27 // pred_fallthru
          _
      $region28: #{tpu_custom_call.1} parent=5 // pred_fallthru
        _
      %p424 = scmp.le.s32.totalorder 2, %s15
      // Predicated region
      $region41: #{tpu_custom_call.1} parent=5 // pred_check
        %p425 = pneg %p424
      $region42: #{tpu_custom_call.1} parent=5 // pred_check_branch
        %427 = sbr.rel (%p425) target = $region44
      $region43: #{tpu_custom_call.1} parent=5 // pred_region
        %s428 = ssub.s32 %s15, 2
        // Predicated region
        $region45: #{tpu_custom_call.1} parent=43 // pred_check
          %p429 = pneg %p121
        $region46: #{tpu_custom_call.1} parent=43 // pred_check_branch
          %431 = sbr.rel (%p429) target = $region48
        $region47: #{tpu_custom_call.1} parent=43 // pred_region
          %s432 = sand.u32 %s106, 1
          %s433 = scalar_lea.sflag [#allocation4], %s432
          %s434 = sand.u32 %s106, 1
          %s435 = smul.addr %s434, 16
          %s436 = scalar_lea.vmem [#allocation7], %s435
          %437 = dma.done %s433, 256
        $region48: #{tpu_custom_call.1} parent=43 // pred_fallthru
          _
      $region44: #{tpu_custom_call.1} parent=5 // pred_fallthru
        _
    $region6: #{tpu_custom_call.1} parent=1 // loop_footer
      %s19 = sadd.s32 1, %s15
    $region7: #{tpu_custom_call.1} parent=1 // loop_footer_branch
      %14 = sbr.rel target = $region3
    $region8: #{tpu_custom_call.1} parent=1 // loop_exit
      _
    %438 = vsyncpa [#allocation3], 1
    %s439 = scalar_lea.sflag [#allocation3], 1
    %440 = vsyncpa %s439, 1
    %441 = vsyncpa [#allocation6], 1
    %442 = vsyncpa [#allocation4], 1
    %s443 = scalar_lea.sflag [#allocation4], 1
    %444 = vsyncpa %s443, 1

</llo_original>
